<compile_context>
chip_gen: v7x
topology: tpu7x:2x2x1
jax: 0.10.0
libtpu: 0.0.40
codegen_flags: <defaults>
</compile_context>

<pallas_src>
import jax
import jax.numpy as jnp
from jax.experimental import pallas as pl
from jax.experimental.pallas import tpu as pltpu

_W_LANE = 512          # lane-dense column width (multiple of 128)
_MAX_TILE_ROWS = 512   # 512x512 f32 = 1 MiB per input per step (double-buffered: 4 MiB)
_NUM_CORES = 2         # shard row-blocks across multi-TC parts; harmless on 1-TC chips
_PAD_LOGIT = -1e4      # sigmoid -> 0 and bce term -> 0 exactly (with target 0)


def _make_kernel(n_elems, tile_rows, w_lane, blocks_per_core):
    """Builds the reduction kernel (all sizes are static Python ints)."""

    def kernel(x_ref, g_ref, acc_ref):
        c = pl.program_id(0)
        i = pl.program_id(1)

        @pl.when(i == 0)
        def _():
            acc_ref[...] = jnp.zeros_like(acc_ref)

        # Native-dtype loads; up-cast in-kernel (free under the DMA).
        x = x_ref[...].astype(jnp.float32)
        g = g_ref[...].astype(jnp.float32)

        def accumulate(xv, gv):
            # Shared-exponential sigmoid + stable BCEWithLogits (3 EUP ops / element).
            e = jnp.exp(-jnp.abs(xv))                      # EUP exp
            d = 1.0 + e
            r = pl.reciprocal(d, approx=True)              # EUP vrcp
            r = r * (2.0 - d * r)                          # one Newton-Raphson refinement
            p = jnp.where(xv >= 0.0, r, e * r)             # sigmoid(xv)
            bce = jnp.maximum(xv, 0.0) - xv * gv + jnp.log1p(e)   # EUP log1p

            def fold(v):                                   # (tile_rows, W) -> (8, W); VALU only
                tr, wl = v.shape
                return jnp.sum(v.reshape(tr // 8, 8, wl), axis=0)

            acc_ref[0, 0] += fold(gv * p)                  # tp partial
            acc_ref[0, 1] += fold(p)                       # sum(sigmoid) partial
            acc_ref[0, 2] += fold(gv)                      # sum(gt) partial
            acc_ref[0, 3] += fold(bce)                     # bce-sum partial

        # Logical (unclamped) row-block index; used for tail detection/masking.
        b_log = c * blocks_per_core + i
        row0 = b_log * tile_rows
        is_full = (row0 + tile_rows) * w_lane <= n_elems   # every element of block is valid

        @pl.when(is_full)
        def _():
            accumulate(x, g)

        @pl.when(jnp.logical_not(is_full))
        def _():
            # Ragged / out-of-range block: mask by global element index and sanitize
            # invalid lanes to inert values (contribute exactly 0 to all partials).
            rows_id = jax.lax.broadcasted_iota(jnp.int32, x.shape, 0)
            cols_id = jax.lax.broadcasted_iota(jnp.int32, x.shape, 1)
            valid = (row0 + rows_id) * w_lane + cols_id < n_elems
            accumulate(jnp.where(valid, x, _PAD_LOGIT),
                       jnp.where(valid, g, 0.0))

    return kernel


def bce_dice_loss(y_pr, y_gt, eps=1e-07, lambda_dice=1.0, lambda_bce=1.0):
    """BCEDiceLoss forward: 1 - f_score(sigmoid(y_pr), y_gt) + BCEWithLogits(y_pr, y_gt)."""
    assert y_pr.shape == y_gt.shape
    n_elems = y_pr.size
    w = _W_LANE
    rows = pl.cdiv(n_elems, w)

    # Zero-copy reshapes of the native-dtype tensors (no astype, no full-array pad).
    flat_x = y_pr.reshape(-1)
    flat_g = y_gt.reshape(-1)
    if n_elems % w != 0:
        # Rare fallback (n_elems not a multiple of 512): pad the tail so the array is
        # rectangular. Pad values never contribute — the kernel masks by element index.
        pad = rows * w - n_elems
        flat_x = jnp.pad(flat_x, (0, pad))
        flat_g = jnp.pad(flat_g, (0, pad))
    x2 = flat_x.reshape(rows, w)
    g2 = flat_g.reshape(rows, w)

    # Row tile: multiple of 16 (covers bf16 sublane tiling), capped at _MAX_TILE_ROWS.
    tile_rows = min(_MAX_TILE_ROWS, 16 * pl.cdiv(rows, 16))
    num_blocks = pl.cdiv(rows, tile_rows)
    blocks_per_core = pl.cdiv(num_blocks, _NUM_CORES)

    # Clamp the block index so core-imbalance blocks re-read a valid block (they are
    # fully masked in-kernel, contributing zero). Avoids OOB block origins.
    def in_map(c, i):
        return (jnp.minimum(c * blocks_per_core + i, num_blocks - 1), 0)

    kernel = _make_kernel(n_elems, tile_rows, w, blocks_per_core)

    out_bytes = _NUM_CORES * 4 * 8 * w * 4
    partials = pl.pallas_call(
        kernel,
        out_shape=jax.ShapeDtypeStruct((_NUM_CORES, 4, 8, w), jnp.float32),
        grid_spec=pltpu.PrefetchScalarGridSpec(
            num_scalar_prefetch=0,
            grid=(_NUM_CORES, blocks_per_core),
            in_specs=[
                pl.BlockSpec((tile_rows, w), in_map),
                pl.BlockSpec((tile_rows, w), in_map),
            ],
            out_specs=pl.BlockSpec((1, 4, 8, w), lambda c, i: (c, 0, 0, 0)),
        ),
        compiler_params=pltpu.CompilerParams(
            dimension_semantics=("parallel", "arbitrary"),
            vmem_limit_bytes=32 * 1024 * 1024,
        ),
        cost_estimate=pl.CostEstimate(
            flops=18 * n_elems,
            transcendentals=3 * n_elems,
            bytes_accessed=n_elems * (y_pr.dtype.itemsize + y_gt.dtype.itemsize) + out_bytes,
        ),
    )(x2, g2)

    sums = jnp.sum(partials, axis=(0, 2, 3))   # (4,): [tp, sum_p, sum_g, bce_sum]
    tp, sum_p, sum_g, bce_sum = sums[0], sums[1], sums[2], sums[3]

    fp = sum_p - tp
    fn = sum_g - tp
    f1 = (2.0 * tp + eps) / (2.0 * tp + fn + fp + eps)   # f_score with beta=1
    dice = 1.0 - f1
    bce = bce_sum / jnp.float32(n_elems)
    return lambda_dice * dice + lambda_bce * bce


def _reference(y_pr, y_gt, eps=1e-07):
    """Pure-JAX reference of the PyTorch forward (for sanity checking)."""
    p = jax.nn.sigmoid(y_pr)
    tp = jnp.sum(y_gt * p)
    fp = jnp.sum(p) - tp
    fn = jnp.sum(y_gt) - tp
    f1 = (2.0 * tp + eps) / (2.0 * tp + fn + fp + eps)
    dice = 1.0 - f1
    bce = jnp.mean(jnp.maximum(y_pr, 0.0) - y_pr * y_gt + jnp.log1p(jnp.exp(-jnp.abs(y_pr))))
    return dice + bce


if __name__ == "__main__":
    key = jax.random.PRNGKey(0)
    k1, k2 = jax.random.split(key)

    # Small NCHW example: batch=2, channels=4, spatial=16x16
    shape = (2, 4, 16, 16)
    y_pr = jax.random.normal(k1, shape, dtype=jnp.float32)            # logits
    y_gt = (jax.random.uniform(k2, shape) > 0.5).astype(jnp.float32)  # binary mask

    loss_fn = jax.jit(bce_dice_loss)   # jit so the wrapper reshapes stay zero-copy
    loss = jax.block_until_ready(loss_fn(y_pr, y_gt))

    ref = jax.block_until_ready(_reference(y_pr, y_gt))
    assert jnp.allclose(loss, ref, rtol=1e-5, atol=1e-5), (loss, ref)

    print("KERNEL_OK")
</pallas_src>

<mosaic_0001>
module attributes {stable_mosaic.version = 11 : i64} {
  func.func @kernel(%arg0: i32, %arg1: i32, %arg2: memref<16x512xf32, #tpu.memory_space<vmem>>, %arg3: memref<16x512xf32, #tpu.memory_space<vmem>>, %arg4: memref<1x4x8x512xf32, #tpu.memory_space<vmem>>) attributes {dimension_semantics = [#tpu.dimension_semantics<parallel>, #tpu.dimension_semantics<arbitrary>], iteration_bounds = array<i64: 2, 1>, scalar_prefetch = 0 : i64, scratch_operands = 0 : i64, tpu.core_type = #tpu.core_type<tc>, window_params = [{transform_indices = @transform_0, window_bounds = array<i64: 16, 512>}, {transform_indices = @transform_1, window_bounds = array<i64: 16, 512>}, {transform_indices = @transform_2, window_bounds = array<i64: 1, 4, 8, 512>}]} {
    %c0_i32 = arith.constant 0 : i32
    %0 = arith.cmpi eq, %arg1, %c0_i32 : i32
    %1 = arith.extui %0 : i1 to i32
    %c0_i32_0 = arith.constant 0 : i32
    %2 = arith.cmpi ne, %1, %c0_i32_0 : i32
    scf.if %2 {
      %cst = arith.constant 0.000000e+00 : f32
      %16 = vector.broadcast %cst : f32 to vector<1x4x8x512xf32>
      %c0_7 = arith.constant 0 : index
      %c0_8 = arith.constant 0 : index
      %c0_9 = arith.constant 0 : index
      %c0_10 = arith.constant 0 : index
      %17 = vector.load %arg4[%c0_7, %c0_8, %c0_9, %c0_10] : memref<1x4x8x512xf32, #tpu.memory_space<vmem>>, vector<1x4x8x512xf32>
      tpu.vector_store %arg4[%c0_7, %c0_8, %c0_9, %c0_10], %16 {strides = array<i32>} : memref<1x4x8x512xf32, #tpu.memory_space<vmem>>, vector<1x4x8x512xf32>,
    } else {
    }
    %c0 = arith.constant 0 : index
    %c0_1 = arith.constant 0 : index
    %3 = vector.load %arg2[%c0, %c0_1] : memref<16x512xf32, #tpu.memory_space<vmem>>, vector<16x512xf32>
    %c0_2 = arith.constant 0 : index
    %c0_3 = arith.constant 0 : index
    %4 = vector.load %arg3[%c0_2, %c0_3] : memref<16x512xf32, #tpu.memory_space<vmem>>, vector<16x512xf32>
    %c1_i32 = arith.constant 1 : i32
    %5 = arith.muli %arg0, %c1_i32 : i32
    %6 = arith.addi %5, %arg1 : i32
    %c16_i32 = arith.constant 16 : i32
    %7 = arith.muli %6, %c16_i32 : i32
    %c16_i32_4 = arith.constant 16 : i32
    %8 = arith.addi %7, %c16_i32_4 : i32
    %c512_i32 = arith.constant 512 : i32
    %9 = arith.muli %8, %c512_i32 : i32
    %c2048_i32 = arith.constant 2048 : i32
    %10 = arith.cmpi sle, %9, %c2048_i32 : i32
    %11 = arith.extui %10 : i1 to i32
    %c0_i32_5 = arith.constant 0 : i32
    %12 = arith.cmpi ne, %11, %c0_i32_5 : i32
    scf.if %12 {
      %16 = math.absf %3 : vector<16x512xf32>
      %cst = arith.constant 0.000000e+00 : f32
      %17 = vector.broadcast %cst : f32 to vector<16x512xf32>
      %18 = arith.subf %17, %16 : vector<16x512xf32>
      %19 = math.exp %18 : vector<16x512xf32>
      %cst_7 = arith.constant 1.000000e+00 : f32
      %20 = vector.broadcast %cst_7 : f32 to vector<16x512xf32>
      %21 = arith.addf %20, %19 : vector<16x512xf32>
      %22 = tpu.reciprocal %21 {approx = true} : vector<16x512xf32> -> vector<16x512xf32>
      %23 = arith.mulf %21, %22 : vector<16x512xf32>
      %cst_8 = arith.constant 2.000000e+00 : f32
      %24 = vector.broadcast %cst_8 : f32 to vector<16x512xf32>
      %25 = arith.subf %24, %23 : vector<16x512xf32>
      %26 = arith.mulf %22, %25 : vector<16x512xf32>
      %cst_9 = arith.constant 0.000000e+00 : f32
      %27 = vector.broadcast %cst_9 : f32 to vector<16x512xf32>
      %28 = arith.cmpf oge, %3, %27 : vector<16x512xf32>
      %29 = arith.mulf %19, %26 : vector<16x512xf32>
      %30 = arith.select %28, %26, %29 : vector<16x512xi1>, vector<16x512xf32>
      %cst_10 = arith.constant 0.000000e+00 : f32
      %31 = vector.broadcast %cst_10 : f32 to vector<16x512xf32>
      %32 = arith.maximumf %3, %31 : vector<16x512xf32>
      %33 = arith.mulf %3, %4 : vector<16x512xf32>
      %34 = arith.subf %32, %33 : vector<16x512xf32>
      %35 = math.log1p %19 : vector<16x512xf32>
      %36 = arith.addf %34, %35 : vector<16x512xf32>
      %c0_11 = arith.constant 0 : index
      %c0_12 = arith.constant 0 : index
      %c0_13 = arith.constant 0 : index
      %c0_14 = arith.constant 0 : index
      %37 = vector.load %arg4[%c0_11, %c0_12, %c0_13, %c0_14] : memref<1x4x8x512xf32, #tpu.memory_space<vmem>>, vector<1x1x8x512xf32>
      %38 = vector.shape_cast %37 : vector<1x1x8x512xf32> to vector<8x512xf32>
      %39 = arith.mulf %4, %30 : vector<16x512xf32>
      %40 = vector.shape_cast %39 : vector<16x512xf32> to vector<2x8x512xf32>
      %cst_15 = arith.constant dense<0.000000e+00> : vector<8x512xf32>
      %41 = vector.multi_reduction <add>, %40, %cst_15 [0] : vector<2x8x512xf32> to vector<8x512xf32>
      %42 = arith.addf %38, %41 : vector<8x512xf32>
      %c0_16 = arith.constant 0 : index
      %c0_17 = arith.constant 0 : index
      %c0_18 = arith.constant 0 : index
      %c0_19 = arith.constant 0 : index
      %43 = vector.load %arg4[%c0_16, %c0_17, %c0_18, %c0_19] : memref<1x4x8x512xf32, #tpu.memory_space<vmem>>, vector<1x1x8x512xf32>
      %44 = vector.shape_cast %43 : vector<1x1x8x512xf32> to vector<8x512xf32>
      %45 = vector.shape_cast %42 : vector<8x512xf32> to vector<1x1x8x512xf32>
      tpu.vector_store %arg4[%c0_16, %c0_17, %c0_18, %c0_19], %45 {strides = array<i32>} : memref<1x4x8x512xf32, #tpu.memory_space<vmem>>, vector<1x1x8x512xf32>,
      %c0_20 = arith.constant 0 : index
      %c1 = arith.constant 1 : index
      %c0_21 = arith.constant 0 : index
      %c0_22 = arith.constant 0 : index
      %46 = vector.load %arg4[%c0_20, %c1, %c0_21, %c0_22] : memref<1x4x8x512xf32, #tpu.memory_space<vmem>>, vector<1x1x8x512xf32>
      %47 = vector.shape_cast %46 : vector<1x1x8x512xf32> to vector<8x512xf32>
      %48 = vector.shape_cast %30 : vector<16x512xf32> to vector<2x8x512xf32>
      %cst_23 = arith.constant dense<0.000000e+00> : vector<8x512xf32>
      %49 = vector.multi_reduction <add>, %48, %cst_23 [0] : vector<2x8x512xf32> to vector<8x512xf32>
      %50 = arith.addf %47, %49 : vector<8x512xf32>
      %c0_24 = arith.constant 0 : index
      %c1_25 = arith.constant 1 : index
      %c0_26 = arith.constant 0 : index
      %c0_27 = arith.constant 0 : index
      %51 = vector.load %arg4[%c0_24, %c1_25, %c0_26, %c0_27] : memref<1x4x8x512xf32, #tpu.memory_space<vmem>>, vector<1x1x8x512xf32>
      %52 = vector.shape_cast %51 : vector<1x1x8x512xf32> to vector<8x512xf32>
      %53 = vector.shape_cast %50 : vector<8x512xf32> to vector<1x1x8x512xf32>
      tpu.vector_store %arg4[%c0_24, %c1_25, %c0_26, %c0_27], %53 {strides = array<i32>} : memref<1x4x8x512xf32, #tpu.memory_space<vmem>>, vector<1x1x8x512xf32>,
      %c0_28 = arith.constant 0 : index
      %c2 = arith.constant 2 : index
      %c0_29 = arith.constant 0 : index
      %c0_30 = arith.constant 0 : index
      %54 = vector.load %arg4[%c0_28, %c2, %c0_29, %c0_30] : memref<1x4x8x512xf32, #tpu.memory_space<vmem>>, vector<1x1x8x512xf32>
      %55 = vector.shape_cast %54 : vector<1x1x8x512xf32> to vector<8x512xf32>
      %56 = vector.shape_cast %4 : vector<16x512xf32> to vector<2x8x512xf32>
      %cst_31 = arith.constant dense<0.000000e+00> : vector<8x512xf32>
      %57 = vector.multi_reduction <add>, %56, %cst_31 [0] : vector<2x8x512xf32> to vector<8x512xf32>
      %58 = arith.addf %55, %57 : vector<8x512xf32>
      %c0_32 = arith.constant 0 : index
      %c2_33 = arith.constant 2 : index
      %c0_34 = arith.constant 0 : index
      %c0_35 = arith.constant 0 : index
      %59 = vector.load %arg4[%c0_32, %c2_33, %c0_34, %c0_35] : memref<1x4x8x512xf32, #tpu.memory_space<vmem>>, vector<1x1x8x512xf32>
      %60 = vector.shape_cast %59 : vector<1x1x8x512xf32> to vector<8x512xf32>
      %61 = vector.shape_cast %58 : vector<8x512xf32> to vector<1x1x8x512xf32>
      tpu.vector_store %arg4[%c0_32, %c2_33, %c0_34, %c0_35], %61 {strides = array<i32>} : memref<1x4x8x512xf32, #tpu.memory_space<vmem>>, vector<1x1x8x512xf32>,
      %c0_36 = arith.constant 0 : index
      %c3 = arith.constant 3 : index
      %c0_37 = arith.constant 0 : index
      %c0_38 = arith.constant 0 : index
      %62 = vector.load %arg4[%c0_36, %c3, %c0_37, %c0_38] : memref<1x4x8x512xf32, #tpu.memory_space<vmem>>, vector<1x1x8x512xf32>
      %63 = vector.shape_cast %62 : vector<1x1x8x512xf32> to vector<8x512xf32>
      %64 = vector.shape_cast %36 : vector<16x512xf32> to vector<2x8x512xf32>
      %cst_39 = arith.constant dense<0.000000e+00> : vector<8x512xf32>
      %65 = vector.multi_reduction <add>, %64, %cst_39 [0] : vector<2x8x512xf32> to vector<8x512xf32>
      %66 = arith.addf %63, %65 : vector<8x512xf32>
      %c0_40 = arith.constant 0 : index
      %c3_41 = arith.constant 3 : index
      %c0_42 = arith.constant 0 : index
      %c0_43 = arith.constant 0 : index
      %67 = vector.load %arg4[%c0_40, %c3_41, %c0_42, %c0_43] : memref<1x4x8x512xf32, #tpu.memory_space<vmem>>, vector<1x1x8x512xf32>
      %68 = vector.shape_cast %67 : vector<1x1x8x512xf32> to vector<8x512xf32>
      %69 = vector.shape_cast %66 : vector<8x512xf32> to vector<1x1x8x512xf32>
      tpu.vector_store %arg4[%c0_40, %c3_41, %c0_42, %c0_43], %69 {strides = array<i32>} : memref<1x4x8x512xf32, #tpu.memory_space<vmem>>, vector<1x1x8x512xf32>,
    } else {
    }
    %true = arith.constant true
    %13 = arith.xori %10, %true : i1
    %14 = arith.extui %13 : i1 to i32
    %c0_i32_6 = arith.constant 0 : i32
    %15 = arith.cmpi ne, %14, %c0_i32_6 : i32
    scf.if %15 {
      %16 = tpu.iota {dimensions = array<i32: 0>} : vector<16x512xi32>
      %17 = tpu.iota {dimensions = array<i32: 1>} : vector<16x512xi32>
      %18 = vector.broadcast %7 : i32 to vector<16x512xi32>
      %19 = arith.addi %18, %16 : vector<16x512xi32>
      %c512_i32_7 = arith.constant 512 : i32
      %20 = vector.broadcast %c512_i32_7 : i32 to vector<16x512xi32>
      %21 = arith.muli %19, %20 : vector<16x512xi32>
      %22 = arith.addi %21, %17 : vector<16x512xi32>
      %c2048_i32_8 = arith.constant 2048 : i32
      %23 = vector.broadcast %c2048_i32_8 : i32 to vector<16x512xi32>
      %24 = arith.cmpi slt, %22, %23 : vector<16x512xi32>
      %cst = arith.constant -1.000000e+04 : f32
      %25 = vector.broadcast %cst : f32 to vector<16x512xf32>
      %26 = arith.select %24, %3, %25 : vector<16x512xi1>, vector<16x512xf32>
      %cst_9 = arith.constant 0.000000e+00 : f32
      %27 = vector.broadcast %cst_9 : f32 to vector<16x512xf32>
      %28 = arith.select %24, %4, %27 : vector<16x512xi1>, vector<16x512xf32>
      %29 = math.absf %26 : vector<16x512xf32>
      %cst_10 = arith.constant 0.000000e+00 : f32
      %30 = vector.broadcast %cst_10 : f32 to vector<16x512xf32>
      %31 = arith.subf %30, %29 : vector<16x512xf32>
      %32 = math.exp %31 : vector<16x512xf32>
      %cst_11 = arith.constant 1.000000e+00 : f32
      %33 = vector.broadcast %cst_11 : f32 to vector<16x512xf32>
      %34 = arith.addf %33, %32 : vector<16x512xf32>
      %35 = tpu.reciprocal %34 {approx = true} : vector<16x512xf32> -> vector<16x512xf32>
      %36 = arith.mulf %34, %35 : vector<16x512xf32>
      %cst_12 = arith.constant 2.000000e+00 : f32
      %37 = vector.broadcast %cst_12 : f32 to vector<16x512xf32>
      %38 = arith.subf %37, %36 : vector<16x512xf32>
      %39 = arith.mulf %35, %38 : vector<16x512xf32>
      %cst_13 = arith.constant 0.000000e+00 : f32
      %40 = vector.broadcast %cst_13 : f32 to vector<16x512xf32>
      %41 = arith.cmpf oge, %26, %40 : vector<16x512xf32>
      %42 = arith.mulf %32, %39 : vector<16x512xf32>
      %43 = arith.select %41, %39, %42 : vector<16x512xi1>, vector<16x512xf32>
      %cst_14 = arith.constant 0.000000e+00 : f32
      %44 = vector.broadcast %cst_14 : f32 to vector<16x512xf32>
      %45 = arith.maximumf %26, %44 : vector<16x512xf32>
      %46 = arith.mulf %26, %28 : vector<16x512xf32>
      %47 = arith.subf %45, %46 : vector<16x512xf32>
      %48 = math.log1p %32 : vector<16x512xf32>
      %49 = arith.addf %47, %48 : vector<16x512xf32>
      %c0_15 = arith.constant 0 : index
      %c0_16 = arith.constant 0 : index
      %c0_17 = arith.constant 0 : index
      %c0_18 = arith.constant 0 : index
      %50 = vector.load %arg4[%c0_15, %c0_16, %c0_17, %c0_18] : memref<1x4x8x512xf32, #tpu.memory_space<vmem>>, vector<1x1x8x512xf32>
      %51 = vector.shape_cast %50 : vector<1x1x8x512xf32> to vector<8x512xf32>
      %52 = arith.mulf %28, %43 : vector<16x512xf32>
      %53 = vector.shape_cast %52 : vector<16x512xf32> to vector<2x8x512xf32>
      %cst_19 = arith.constant dense<0.000000e+00> : vector<8x512xf32>
      %54 = vector.multi_reduction <add>, %53, %cst_19 [0] : vector<2x8x512xf32> to vector<8x512xf32>
      %55 = arith.addf %51, %54 : vector<8x512xf32>
      %c0_20 = arith.constant 0 : index
      %c0_21 = arith.constant 0 : index
      %c0_22 = arith.constant 0 : index
      %c0_23 = arith.constant 0 : index
      %56 = vector.load %arg4[%c0_20, %c0_21, %c0_22, %c0_23] : memref<1x4x8x512xf32, #tpu.memory_space<vmem>>, vector<1x1x8x512xf32>
      %57 = vector.shape_cast %56 : vector<1x1x8x512xf32> to vector<8x512xf32>
      %58 = vector.shape_cast %55 : vector<8x512xf32> to vector<1x1x8x512xf32>
      tpu.vector_store %arg4[%c0_20, %c0_21, %c0_22, %c0_23], %58 {strides = array<i32>} : memref<1x4x8x512xf32, #tpu.memory_space<vmem>>, vector<1x1x8x512xf32>,
      %c0_24 = arith.constant 0 : index
      %c1 = arith.constant 1 : index
      %c0_25 = arith.constant 0 : index
      %c0_26 = arith.constant 0 : index
      %59 = vector.load %arg4[%c0_24, %c1, %c0_25, %c0_26] : memref<1x4x8x512xf32, #tpu.memory_space<vmem>>, vector<1x1x8x512xf32>
      %60 = vector.shape_cast %59 : vector<1x1x8x512xf32> to vector<8x512xf32>
      %61 = vector.shape_cast %43 : vector<16x512xf32> to vector<2x8x512xf32>
      %cst_27 = arith.constant dense<0.000000e+00> : vector<8x512xf32>
      %62 = vector.multi_reduction <add>, %61, %cst_27 [0] : vector<2x8x512xf32> to vector<8x512xf32>
      %63 = arith.addf %60, %62 : vector<8x512xf32>
      %c0_28 = arith.constant 0 : index
      %c1_29 = arith.constant 1 : index
      %c0_30 = arith.constant 0 : index
      %c0_31 = arith.constant 0 : index
      %64 = vector.load %arg4[%c0_28, %c1_29, %c0_30, %c0_31] : memref<1x4x8x512xf32, #tpu.memory_space<vmem>>, vector<1x1x8x512xf32>
      %65 = vector.shape_cast %64 : vector<1x1x8x512xf32> to vector<8x512xf32>
      %66 = vector.shape_cast %63 : vector<8x512xf32> to vector<1x1x8x512xf32>
      tpu.vector_store %arg4[%c0_28, %c1_29, %c0_30, %c0_31], %66 {strides = array<i32>} : memref<1x4x8x512xf32, #tpu.memory_space<vmem>>, vector<1x1x8x512xf32>,
      %c0_32 = arith.constant 0 : index
      %c2 = arith.constant 2 : index
      %c0_33 = arith.constant 0 : index
      %c0_34 = arith.constant 0 : index
      %67 = vector.load %arg4[%c0_32, %c2, %c0_33, %c0_34] : memref<1x4x8x512xf32, #tpu.memory_space<vmem>>, vector<1x1x8x512xf32>
      %68 = vector.shape_cast %67 : vector<1x1x8x512xf32> to vector<8x512xf32>
      %69 = vector.shape_cast %28 : vector<16x512xf32> to vector<2x8x512xf32>
      %cst_35 = arith.constant dense<0.000000e+00> : vector<8x512xf32>
      %70 = vector.multi_reduction <add>, %69, %cst_35 [0] : vector<2x8x512xf32> to vector<8x512xf32>
      %71 = arith.addf %68, %70 : vector<8x512xf32>
      %c0_36 = arith.constant 0 : index
      %c2_37 = arith.constant 2 : index
      %c0_38 = arith.constant 0 : index
      %c0_39 = arith.constant 0 : index
      %72 = vector.load %arg4[%c0_36, %c2_37, %c0_38, %c0_39] : memref<1x4x8x512xf32, #tpu.memory_space<vmem>>, vector<1x1x8x512xf32>
      %73 = vector.shape_cast %72 : vector<1x1x8x512xf32> to vector<8x512xf32>
      %74 = vector.shape_cast %71 : vector<8x512xf32> to vector<1x1x8x512xf32>
      tpu.vector_store %arg4[%c0_36, %c2_37, %c0_38, %c0_39], %74 {strides = array<i32>} : memref<1x4x8x512xf32, #tpu.memory_space<vmem>>, vector<1x1x8x512xf32>,
      %c0_40 = arith.constant 0 : index
      %c3 = arith.constant 3 : index
      %c0_41 = arith.constant 0 : index
      %c0_42 = arith.constant 0 : index
      %75 = vector.load %arg4[%c0_40, %c3, %c0_41, %c0_42] : memref<1x4x8x512xf32, #tpu.memory_space<vmem>>, vector<1x1x8x512xf32>
      %76 = vector.shape_cast %75 : vector<1x1x8x512xf32> to vector<8x512xf32>
      %77 = vector.shape_cast %49 : vector<16x512xf32> to vector<2x8x512xf32>
      %cst_43 = arith.constant dense<0.000000e+00> : vector<8x512xf32>
      %78 = vector.multi_reduction <add>, %77, %cst_43 [0] : vector<2x8x512xf32> to vector<8x512xf32>
      %79 = arith.addf %76, %78 : vector<8x512xf32>
      %c0_44 = arith.constant 0 : index
      %c3_45 = arith.constant 3 : index
      %c0_46 = arith.constant 0 : index
      %c0_47 = arith.constant 0 : index
      %80 = vector.load %arg4[%c0_44, %c3_45, %c0_46, %c0_47] : memref<1x4x8x512xf32, #tpu.memory_space<vmem>>, vector<1x1x8x512xf32>
      %81 = vector.shape_cast %80 : vector<1x1x8x512xf32> to vector<8x512xf32>
      %82 = vector.shape_cast %79 : vector<8x512xf32> to vector<1x1x8x512xf32>
      tpu.vector_store %arg4[%c0_44, %c3_45, %c0_46, %c0_47], %82 {strides = array<i32>} : memref<1x4x8x512xf32, #tpu.memory_space<vmem>>, vector<1x1x8x512xf32>,
    } else {
    }
    return
  }
  func.func @transform_0(%arg0: i32, %arg1: i32) -> (i32, i32) {
    %c1_i32 = arith.constant 1 : i32
    %0 = arith.muli %arg0, %c1_i32 : i32
    %1 = arith.addi %0, %arg1 : i32
    %c0_i32 = arith.constant 0 : i32
    %2 = arith.minsi %1, %c0_i32 : i32
    %c0_i32_0 = arith.constant 0 : i32
    %c0_i32_1 = arith.constant 0 : i32
    return %2, %c0_i32_0 : i32, i32
  }
  func.func @transform_1(%arg0: i32, %arg1: i32) -> (i32, i32) {
    %c1_i32 = arith.constant 1 : i32
    %0 = arith.muli %arg0, %c1_i32 : i32
    %1 = arith.addi %0, %arg1 : i32
    %c0_i32 = arith.constant 0 : i32
    %2 = arith.minsi %1, %c0_i32 : i32
    %c0_i32_0 = arith.constant 0 : i32
    %c0_i32_1 = arith.constant 0 : i32
    return %2, %c0_i32_0 : i32, i32
  }
  func.func @transform_2(%arg0: i32, %arg1: i32) -> (i32, i32, i32, i32) {
    %c0_i32 = arith.constant 0 : i32
    %c0_i32_0 = arith.constant 0 : i32
    %c0_i32_1 = arith.constant 0 : i32
    %c0_i32_2 = arith.constant 0 : i32
    return %arg0, %c0_i32, %c0_i32_0, %c0_i32_1 : i32, i32, i32, i32
  }
}

</mosaic_0001>

<llo_original>
// kernel: bce_dice_loss.1
$region0: #{bce_dice_loss.1}
  #allocation0 [shape = 'u32[]', space=smem, size = 0x4, offset = 0x4, fixed_abs, tag = 'smem constant byte address 0x4 - core index']
  #allocation1 [shape = 'u32[144,128]{1,0:T(1,128)}', space=vmem, size = 0x12000, scoped, tag = 'internal scratch']
  %s0 = inlined_call_operand.vmem [shape: f32[4,512], index: 0, kind: input, shape index: {}]
  %s1 = inlined_call_operand.vmem [shape: f32[4,512], index: 1, kind: input, shape index: {}]
  %s2 = inlined_call_operand.vmem [shape: f32[2,4,8,512], index: 2, kind: output, shape index: {}]
  %s3 = sld [smem:[#allocation0]]
  $region53: #{bce_dice_loss.1} parent=0
    _
  %s5 = ssub.s32 1, %s3
  %s6 = scalar_select 0, %s5, %s3
  loop: start=0, step=1, limit=4
  $region2: #{bce_dice_loss.1} parent=0 // loop_pre_header
    _
  $region3: #{bce_dice_loss.1} parent=0 // loop_header
    %s8 = sphi 0, %s12
    %p9 = scmp.ge.s32.totalorder %s8, 4
    %s15 = sphi 0, %s27
    %s16 = sphi 0, %s23
    %s17 = sphi 0, %s15
    %s18 = sphi 0, %s16
    %s19 = sphi 0, %s17
    %s20 = sphi 0, %s18
    %s36 = sphi 0, %s38
    %s39 = sphi 0, %s36
    %s40 = sphi 0, %s39
    %s56 = sphi 0, %s40
    %s68 = sphi 0, %s70
    %s71 = sphi 0, %s68
    %s72 = sphi 0, %s71
    %s88 = sphi 0, %s72
    %s94 = sphi 0, %s96
    %s97 = sphi 0, %s94
    %s98 = sphi 0, %s97
    %s114 = sphi 0, %s98
  $region4: #{bce_dice_loss.1} parent=0 // loop_header_branch
    %11 = sbr.rel (%p9) target = $region8
  $region5: #{bce_dice_loss.1} parent=0 // loop_body
    %s13 = ssub.s32 %s8, 1
    %s14 = ssub.s32 %s8, 2
    %s21 = sadd.s32 1, %s16
    %p22 = scmp.ge.s32.totalorder %s21, 1
    %s23 = scalar_select %p22, 0, %s21
    %s24 = sadd.s32 1, %s15
    %s25 = scalar_select %p22, %s24, %s15
    %p26 = scmp.ge.s32.totalorder %s25, 2
    %s27 = scalar_select %p26, 0, %s25
    %s28 = sadd.s32 %s15, %s16
    %p29 = scmp.lt.s32.totalorder %s28, 0
    %s30 = scalar_select %p29, %s28, 0
    %s31 = sadd.s32 %s27, %s23
    %p32 = scmp.lt.s32.totalorder %s31, 0
    %s33 = scalar_select %p32, %s31, 0
    %s34 = ssub.s32 %s30, %s33
    %p35 = scmp.eq.s32.totalorder %s34, 0
    %s37 = sadd.s32 %s36, 1
    %s38 = scalar_select %p35, %s36, %s37
    %p41 = pneg %p35
    %p42 = scmp.eq.s32.totalorder %s8, 1
    %p43 = por %p41, %p42
    %p44 = scmp.ne.s32.totalorder %s36, %s39
    %p45 = scmp.eq.s32.totalorder %s8, 0
    %p46 = por %p44, %p45
    %p47 = scmp.ne.s32.totalorder %s36, %s39
    %p48 = scmp.eq.s32.totalorder %s13, 1
    %p49 = por %p47, %p48
    %p50 = scmp.ne.s32.totalorder %s39, %s40
    %p51 = scmp.eq.s32.totalorder %s13, 0
    %p52 = por %p50, %p51
    %p53 = scmp.ne.s32.totalorder %s39, %s40
    %p54 = scmp.eq.s32.totalorder %s14, 1
    %p55 = por %p53, %p54
    %p57 = scmp.ne.s32.totalorder %s40, %s56
    %p58 = scmp.eq.s32.totalorder %s14, 0
    %p59 = por %p57, %p58
    %s60 = sadd.s32 %s15, %s16
    %p61 = scmp.lt.s32.totalorder %s60, 0
    %s62 = scalar_select %p61, %s60, 0
    %s63 = sadd.s32 %s27, %s23
    %p64 = scmp.lt.s32.totalorder %s63, 0
    %s65 = scalar_select %p64, %s63, 0
    %s66 = ssub.s32 %s62, %s65
    %p67 = scmp.eq.s32.totalorder %s66, 0
    %s69 = sadd.s32 %s68, 1
    %s70 = scalar_select %p67, %s68, %s69
    %p73 = pneg %p67
    %p74 = scmp.eq.s32.totalorder %s8, 1
    %p75 = por %p73, %p74
    %p76 = scmp.ne.s32.totalorder %s68, %s71
    %p77 = scmp.eq.s32.totalorder %s8, 0
    %p78 = por %p76, %p77
    %p79 = scmp.ne.s32.totalorder %s68, %s71
    %p80 = scmp.eq.s32.totalorder %s13, 1
    %p81 = por %p79, %p80
    %p82 = scmp.ne.s32.totalorder %s71, %s72
    %p83 = scmp.eq.s32.totalorder %s13, 0
    %p84 = por %p82, %p83
    %p85 = scmp.ne.s32.totalorder %s71, %s72
    %p86 = scmp.eq.s32.totalorder %s14, 1
    %p87 = por %p85, %p86
    %p89 = scmp.ne.s32.totalorder %s72, %s88
    %p90 = scmp.eq.s32.totalorder %s14, 0
    %p91 = por %p89, %p90
    %s92 = ssub.s32 %s15, %s27
    %p93 = scmp.eq.s32.totalorder %s92, 0
    %s95 = sadd.s32 %s94, 1
    %s96 = scalar_select %p93, %s94, %s95
    %p99 = pneg %p93
    %p100 = scmp.eq.s32.totalorder %s8, 1
    %p101 = por %p99, %p100
    %p102 = scmp.ne.s32.totalorder %s94, %s97
    %p103 = scmp.eq.s32.totalorder %s8, 0
    %p104 = por %p102, %p103
    %p105 = scmp.ne.s32.totalorder %s94, %s97
    %p106 = scmp.eq.s32.totalorder %s13, 1
    %p107 = por %p105, %p106
    %p108 = scmp.ne.s32.totalorder %s97, %s98
    %p109 = scmp.eq.s32.totalorder %s13, 0
    %p110 = por %p108, %p109
    %p111 = scmp.ne.s32.totalorder %s97, %s98
    %p112 = scmp.eq.s32.totalorder %s14, 1
    %p113 = por %p111, %p112
    %p115 = scmp.ne.s32.totalorder %s98, %s114
    %p116 = scmp.eq.s32.totalorder %s14, 0
    %p117 = por %p115, %p116
    %p118 = scmp.le.s32.totalorder 1, %s8
    %p119 = scmp.lt.s32.totalorder %s8, 3
    %p120 = pnand %p118, %p119
    %p121 = pneg %p120
    // Predicated region
    $region9: #{bce_dice_loss.1} parent=5 // pred_check
      _
    $region10: #{bce_dice_loss.1} parent=5 // pred_check_branch
      %123 = sbr.rel (%p120) target = $region12
    $region11: #{bce_dice_loss.1} parent=5 // pred_region
      %s124 = ssub.s32 %s8, 1
    $region12: #{bce_dice_loss.1} parent=5 // pred_fallthru
      _
    %p125 = scmp.lt.s32.totalorder %s8, 2
    // Predicated region
    $region13: #{bce_dice_loss.1} parent=5 // pred_check
      %p126 = pneg %p125
    $region14: #{bce_dice_loss.1} parent=5 // pred_check_branch
      %128 = sbr.rel (%p126) target = $region16
    $region15: #{bce_dice_loss.1} parent=5 // pred_region
      // Predicated region
      $region17: #{bce_dice_loss.1} parent=15 // pred_check
        %p129 = pneg %p46
      $region18: #{bce_dice_loss.1} parent=15 // pred_check_branch
        %131 = sbr.rel (%p129) target = $region20
      $region19: #{bce_dice_loss.1} parent=15 // pred_region
        %s132 = sadd.s32 %s15, %s16
        %p133 = scmp.lt.s32.totalorder %s132, 0
        %s134 = scalar_select %p133, %s132, 0
        %s135 = smul.u32 4, %s134
        %s136 = ssub.s32 1, %s135
        %s137 = smul.u32 64, %s136
        %s138 = smul.u32 %s137, 4
        %p139 = scmp.lt.s32.totalorder %s135, 0
        %s140 = scalar_select %p139, %s135, 0
        %s141 = smul.addr %s140, 4
        %s142 = smul.addr %s141, 4
        %s143 = scalar_lea.vmem %s0, %s142
        %s144 = sadd.s32 %s15, %s16
        %p145 = scmp.lt.s32.totalorder %s144, 0
        %s146 = scalar_select %p145, %s144, 0
        %s147 = smul.u32 4, %s146
        %s148 = ssub.s32 1, %s147
        %s149 = smul.u32 64, %s148
        %s150 = smul.u32 %s149, 4
      $region20: #{bce_dice_loss.1} parent=15 // pred_fallthru
        _
      // Predicated region
      $region21: #{bce_dice_loss.1} parent=15 // pred_check
        %p151 = pneg %p78
      $region22: #{bce_dice_loss.1} parent=15 // pred_check_branch
        %153 = sbr.rel (%p151) target = $region24
      $region23: #{bce_dice_loss.1} parent=15 // pred_region
        %s154 = sadd.s32 %s15, %s16
        %p155 = scmp.lt.s32.totalorder %s154, 0
        %s156 = scalar_select %p155, %s154, 0
        %s157 = smul.u32 4, %s156
        %s158 = ssub.s32 1, %s157
        %s159 = smul.u32 64, %s158
        %s160 = smul.u32 %s159, 4
        %p161 = scmp.lt.s32.totalorder %s157, 0
        %s162 = scalar_select %p161, %s157, 0
        %s163 = smul.addr %s162, 4
        %s164 = smul.addr %s163, 4
        %s165 = scalar_lea.vmem %s1, %s164
        %s166 = sadd.s32 %s15, %s16
        %p167 = scmp.lt.s32.totalorder %s166, 0
        %s168 = scalar_select %p167, %s166, 0
        %s169 = smul.u32 4, %s168
        %s170 = ssub.s32 1, %s169
        %s171 = smul.u32 64, %s170
        %s172 = smul.u32 %s171, 4
      $region24: #{bce_dice_loss.1} parent=15 // pred_fallthru
        _
    $region16: #{bce_dice_loss.1} parent=5 // pred_fallthru
      _
    %p173 = scmp.le.s32.totalorder 1, %s8
    %p174 = scmp.lt.s32.totalorder %s8, 3
    %p175 = pnand %p173, %p174
    %p176 = pneg %p175
    // Predicated region
    $region25: #{bce_dice_loss.1} parent=5 // pred_check
      _
    $region26: #{bce_dice_loss.1} parent=5 // pred_check_branch
      %178 = sbr.rel (%p175) target = $region28
    $region27: #{bce_dice_loss.1} parent=5 // pred_region
      %s179 = ssub.s32 %s8, 1
      %s180 = sadd.s32 %s17, %s18
      %p181 = scmp.lt.s32.totalorder %s180, 0
      %s182 = scalar_select %p181, %s180, 0
      %s183 = smul.u32 4, %s182
      %s184 = ssub.s32 1, %s183
      %s185 = smul.u32 64, %s184
      %s186 = smul.u32 %s185, 4
      %p187 = scmp.lt.s32.totalorder %s183, 0
      %s188 = scalar_select %p187, %s183, 0
      %s189 = smul.addr %s188, 4
      %s190 = smul.addr %s189, 4
      %s191 = scalar_lea.vmem %s0, %s190
      %p192 = pneg %p52
      %p193 = pneg %p49
      %s194 = sadd.s32 %s17, %s18
      %p195 = scmp.lt.s32.totalorder %s194, 0
      %s196 = scalar_select %p195, %s194, 0
      %s197 = smul.u32 4, %s196
      %s198 = ssub.s32 1, %s197
      %s199 = smul.u32 64, %s198
      %s200 = smul.u32 %s199, 4
      %p201 = scmp.lt.s32.totalorder %s197, 0
      %s202 = scalar_select %p201, %s197, 0
      %s203 = smul.addr %s202, 4
      %s204 = smul.addr %s203, 4
      %s205 = scalar_lea.vmem %s1, %s204
      %p206 = pneg %p84
      %p207 = pneg %p81
      %p208 = pneg %p110
      %p209 = pneg %p107
      %p210 = scmp.lt.s32.totalorder %s17, 1
      %s211 = scalar_select %p210, %s17, 1
      %s212 = smul.addr %s211, 16
      %s213 = smul.addr %s212, 8
      %s214 = scalar_lea.vmem %s2, %s213
      %s215 = sadd.s32 %s17, %s18
      %p216 = scmp.lt.s32.totalorder %s215, 0
      %s217 = scalar_select %p216, %s215, 0
      %s218 = smul.u32 4, %s217
      %s219 = ssub.s32 1, %s218
      %s220 = smul.u32 64, %s219
      %s221 = smul.u32 %s220, 4
      %p222 = scmp.lt.s32.totalorder %s218, 0
      %s223 = scalar_select %p222, %s218, 0
      %s224 = smul.addr %s223, 4
      %s225 = smul.addr %s224, 4
      %s226 = scalar_lea.vmem %s0, %s225
      %s227 = sadd.s32 %s17, %s18
      %p228 = scmp.lt.s32.totalorder %s227, 0
      %s229 = scalar_select %p228, %s227, 0
      %s230 = smul.u32 4, %s229
      %s231 = ssub.s32 1, %s230
      %s232 = smul.u32 64, %s231
      %s233 = smul.u32 %s232, 4
      %s234 = sadd.s32 %s17, %s18
      %p235 = scmp.lt.s32.totalorder %s234, 0
      %s236 = scalar_select %p235, %s234, 0
      %s237 = smul.u32 4, %s236
      %s238 = ssub.s32 1, %s237
      %s239 = smul.u32 64, %s238
      %s240 = smul.u32 %s239, 4
      %p241 = scmp.lt.s32.totalorder %s237, 0
      %s242 = scalar_select %p241, %s237, 0
      %s243 = smul.addr %s242, 4
      %s244 = smul.addr %s243, 4
      %s245 = scalar_lea.vmem %s1, %s244
      %s246 = sadd.s32 %s17, %s18
      %p247 = scmp.lt.s32.totalorder %s246, 0
      %s248 = scalar_select %p247, %s246, 0
      %s249 = smul.u32 4, %s248
      %s250 = ssub.s32 1, %s249
      %s251 = smul.u32 64, %s250
      %s252 = smul.u32 %s251, 4
      %p253 = scmp.lt.s32.totalorder %s17, 1
      %s254 = scalar_select %p253, %s17, 1
      %s255 = smul.addr %s254, 16
      %s256 = smul.addr %s255, 8
      %s257 = scalar_lea.vmem %s2, %s256
      %p258 = scmp.eq.s32.totalorder %s18, 0
      // Predicated region
      $region29: #{bce_dice_loss.1} parent=27 // pred_check
        %p259 = pneg %p258
      $region30: #{bce_dice_loss.1} parent=27 // pred_check_branch
        %261 = sbr.rel (%p259) target = $region32
      $region31: #{bce_dice_loss.1} parent=27 // pred_region
        %262 = vst [vmem:[%s257] sm:$0xff] 0.0
        %263 = vst [vmem:[%s257 + $0x8] sm:$0xff] 0.0
        %264 = vst [vmem:[%s257 + $0x10] sm:$0xff] 0.0
        %265 = vst [vmem:[%s257 + $0x18] sm:$0xff] 0.0
        %266 = vst [vmem:[%s257 + $0x20] sm:$0xff] 0.0
        %267 = vst [vmem:[%s257 + $0x28] sm:$0xff] 0.0
        %268 = vst [vmem:[%s257 + $0x30] sm:$0xff] 0.0
        %269 = vst [vmem:[%s257 + $0x38] sm:$0xff] 0.0
        %270 = vst [vmem:[%s257 + $0x40] sm:$0xff] 0.0
        %271 = vst [vmem:[%s257 + $0x48] sm:$0xff] 0.0
        %272 = vst [vmem:[%s257 + $0x50] sm:$0xff] 0.0
        %273 = vst [vmem:[%s257 + $0x58] sm:$0xff] 0.0
        %274 = vst [vmem:[%s257 + $0x60] sm:$0xff] 0.0
        %275 = vst [vmem:[%s257 + $0x68] sm:$0xff] 0.0
        %276 = vst [vmem:[%s257 + $0x70] sm:$0xff] 0.0
        %277 = vst [vmem:[%s257 + $0x78] sm:$0xff] 0.0
      $region32: #{bce_dice_loss.1} parent=27 // pred_fallthru
        _
      %v278 = vld [vmem:[%s226] sm:$0xff]
      %v279 = vld [vmem:[%s226 + $0x8] sm:$0xff]
      %v280 = vld [vmem:[%s226 + $0x10] sm:$0xff]
      %v281 = vld [vmem:[%s226 + $0x18] sm:$0xff]
      %v282 = vld [vmem:[%s226 + $0x20] sm:$0xff]
      %v283 = vld [vmem:[%s226 + $0x28] sm:$0xff]
      %v284 = vld [vmem:[%s226 + $0x30] sm:$0xff]
      %v285 = vld [vmem:[%s226 + $0x38] sm:$0xff]
      %v286 = vld [vmem:[%s245] sm:$0xff]
      %v287 = vld [vmem:[%s245 + $0x8] sm:$0xff]
      %v288 = vld [vmem:[%s245 + $0x10] sm:$0xff]
      %v289 = vld [vmem:[%s245 + $0x18] sm:$0xff]
      %v290 = vld [vmem:[%s245 + $0x20] sm:$0xff]
      %v291 = vld [vmem:[%s245 + $0x28] sm:$0xff]
      %v292 = vld [vmem:[%s245 + $0x30] sm:$0xff]
      %v293 = vld [vmem:[%s245 + $0x38] sm:$0xff]
      %s294 = sadd.s32 %s17, %s18
      %s295 = smul.u32 %s294, 16
      %s296 = sadd.s32 %s295, 16
      %s297 = smul.u32 %s296, 512
      %p298 = scmp.le.s32.totalorder %s297, 2048
      // Predicated region
      $region33: #{bce_dice_loss.1} parent=27 // pred_check
        %p299 = pneg %p298
      $region34: #{bce_dice_loss.1} parent=27 // pred_check_branch
        %301 = sbr.rel (%p299) target = $region36
      $region35: #{bce_dice_loss.1} parent=27 // pred_region
        %v302 = vand.u32 2147483647, %v278
        %v303 = vand.u32 2147483647, %v279
        %v304 = vand.u32 2147483647, %v280
        %v305 = vand.u32 2147483647, %v281
        %v306 = vand.u32 2147483647, %v282
        %v307 = vand.u32 2147483647, %v283
        %v308 = vand.u32 2147483647, %v284
        %v309 = vand.u32 2147483647, %v285
        %v310 = vsub.f32 0.0, %v302
        %v311 = vsub.f32 0.0, %v303
        %v312 = vsub.f32 0.0, %v304
        %v313 = vsub.f32 0.0, %v305
        %v314 = vsub.f32 0.0, %v306
        %v315 = vsub.f32 0.0, %v307
        %v316 = vsub.f32 0.0, %v308
        %v317 = vsub.f32 0.0, %v309
        %v318 = vmul.f32 %v310, 1.442695
        %v319 = vpow.pop %v318
        %v320 = vmul.f32 %v311, 1.442695
        %v321 = vpow.pop %v320
        %v322 = vmul.f32 %v312, 1.442695
        %v323 = vpow.pop %v322
        %v324 = vmul.f32 %v313, 1.442695
        %v325 = vpow.pop %v324
        %v326 = vmul.f32 %v314, 1.442695
        %v327 = vpow.pop %v326
        %v328 = vmul.f32 %v315, 1.442695
        %v329 = vpow.pop %v328
        %v330 = vmul.f32 %v316, 1.442695
        %v331 = vpow.pop %v330
        %v332 = vmul.f32 %v317, 1.442695
        %v333 = vpow.pop %v332
        %v334 = vadd.f32 %v319, 1.0
        %v335 = vadd.f32 %v321, 1.0
        %v336 = vadd.f32 %v323, 1.0
        %v337 = vadd.f32 %v325, 1.0
        %v338 = vadd.f32 %v327, 1.0
        %v339 = vadd.f32 %v329, 1.0
        %v340 = vadd.f32 %v331, 1.0
        %v341 = vadd.f32 %v333, 1.0
        %v342 = vrcp.pop %v334
        %v343 = vrcp.pop %v335
        %v344 = vrcp.pop %v336
        %v345 = vrcp.pop %v337
        %v346 = vrcp.pop %v338
        %v347 = vrcp.pop %v339
        %v348 = vrcp.pop %v340
        %v349 = vrcp.pop %v341
        %v350 = vmul.f32 %v334, %v342
        %v351 = vmul.f32 %v335, %v343
        %v352 = vmul.f32 %v336, %v344
        %v353 = vmul.f32 %v337, %v345
        %v354 = vmul.f32 %v338, %v346
        %v355 = vmul.f32 %v339, %v347
        %v356 = vmul.f32 %v340, %v348
        %v357 = vmul.f32 %v341, %v349
        %v358 = vsub.f32 2.0, %v350
        %v359 = vsub.f32 2.0, %v351
        %v360 = vsub.f32 2.0, %v352
        %v361 = vsub.f32 2.0, %v353
        %v362 = vsub.f32 2.0, %v354
        %v363 = vsub.f32 2.0, %v355
        %v364 = vsub.f32 2.0, %v356
        %v365 = vsub.f32 2.0, %v357
        %v366 = vmul.f32 %v342, %v358
        %v367 = vmul.f32 %v343, %v359
        %v368 = vmul.f32 %v344, %v360
        %v369 = vmul.f32 %v345, %v361
        %v370 = vmul.f32 %v346, %v362
        %v371 = vmul.f32 %v347, %v363
        %v372 = vmul.f32 %v348, %v364
        %v373 = vmul.f32 %v349, %v365
        %vm374 = vcmp.ge.f32.partialorder %v278, 0.0
        %vm375 = vcmp.ge.f32.partialorder %v279, 0.0
        %vm376 = vcmp.ge.f32.partialorder %v280, 0.0
        %vm377 = vcmp.ge.f32.partialorder %v281, 0.0
        %vm378 = vcmp.ge.f32.partialorder %v282, 0.0
        %vm379 = vcmp.ge.f32.partialorder %v283, 0.0
        %vm380 = vcmp.ge.f32.partialorder %v284, 0.0
        %vm381 = vcmp.ge.f32.partialorder %v285, 0.0
        %v382 = vmul.f32 %v319, %v366
        %v383 = vmul.f32 %v321, %v367
        %v384 = vmul.f32 %v323, %v368
        %v385 = vmul.f32 %v325, %v369
        %v386 = vmul.f32 %v327, %v370
        %v387 = vmul.f32 %v329, %v371
        %v388 = vmul.f32 %v331, %v372
        %v389 = vmul.f32 %v333, %v373
        %v390 = vsel %vm374, %v366, %v382
        %v391 = vsel %vm375, %v367, %v383
        %v392 = vsel %vm376, %v368, %v384
        %v393 = vsel %vm377, %v369, %v385
        %v394 = vsel %vm378, %v370, %v386
        %v395 = vsel %vm379, %v371, %v387
        %v396 = vsel %vm380, %v372, %v388
        %v397 = vsel %vm381, %v373, %v389
        %v398 = vmax.f32 %v278, 0.0
        %v399 = vmax.f32 %v279, 0.0
        %v400 = vmax.f32 %v280, 0.0
        %v401 = vmax.f32 %v281, 0.0
        %v402 = vmax.f32 %v282, 0.0
        %v403 = vmax.f32 %v283, 0.0
        %v404 = vmax.f32 %v284, 0.0
        %v405 = vmax.f32 %v285, 0.0
        %v406 = vmul.f32 %v278, %v286
        %v407 = vmul.f32 %v279, %v287
        %v408 = vmul.f32 %v280, %v288
        %v409 = vmul.f32 %v281, %v289
        %v410 = vmul.f32 %v282, %v290
        %v411 = vmul.f32 %v283, %v291
        %v412 = vmul.f32 %v284, %v292
        %v413 = vmul.f32 %v285, %v293
        %v414 = vsub.f32 %v398, %v406
        %v415 = vsub.f32 %v399, %v407
        %v416 = vsub.f32 %v400, %v408
        %v417 = vsub.f32 %v401, %v409
        %v418 = vsub.f32 %v402, %v410
        %v419 = vsub.f32 %v403, %v411
        %v420 = vsub.f32 %v404, %v412
        %v421 = vsub.f32 %v405, %v413
        %v422 = vadd.f32 %v319, 1.0
        %v423 = vlog2.pop %v422
        %v424 = vmul.f32 %v423, 0.6931472
        %v425 = vmul.f32 -0.5, %v319
        %v426 = vadd.f32 %v425, 1.0
        %v427 = vmul.f32 %v426, %v319
        %v428 = vand.u32 2147483647, %v319
        %vm429 = vcmp.lt.f32.partialorder %v428, 0.0004427343
        %v430 = vsel %vm429, %v427, %v424
        %v431 = vadd.f32 %v321, 1.0
        %v432 = vlog2.pop %v431
        %v433 = vmul.f32 %v432, 0.6931472
        %v434 = vmul.f32 -0.5, %v321
        %v435 = vadd.f32 %v434, 1.0
        %v436 = vmul.f32 %v435, %v321
        %v437 = vand.u32 2147483647, %v321
        %vm438 = vcmp.lt.f32.partialorder %v437, 0.0004427343
        %v439 = vsel %vm438, %v436, %v433
        %v440 = vadd.f32 %v323, 1.0
        %v441 = vlog2.pop %v440
        %v442 = vmul.f32 %v441, 0.6931472
        %v443 = vmul.f32 -0.5, %v323
        %v444 = vadd.f32 %v443, 1.0
        %v445 = vmul.f32 %v444, %v323
        %v446 = vand.u32 2147483647, %v323
        %vm447 = vcmp.lt.f32.partialorder %v446, 0.0004427343
        %v448 = vsel %vm447, %v445, %v442
        %v449 = vadd.f32 %v325, 1.0
        %v450 = vlog2.pop %v449
        %v451 = vmul.f32 %v450, 0.6931472
        %v452 = vmul.f32 -0.5, %v325
        %v453 = vadd.f32 %v452, 1.0
        %v454 = vmul.f32 %v453, %v325
        %v455 = vand.u32 2147483647, %v325
        %vm456 = vcmp.lt.f32.partialorder %v455, 0.0004427343
        %v457 = vsel %vm456, %v454, %v451
        %v458 = vadd.f32 %v327, 1.0
        %v459 = vlog2.pop %v458
        %v460 = vmul.f32 %v459, 0.6931472
        %v461 = vmul.f32 -0.5, %v327
        %v462 = vadd.f32 %v461, 1.0
        %v463 = vmul.f32 %v462, %v327
        %v464 = vand.u32 2147483647, %v327
        %vm465 = vcmp.lt.f32.partialorder %v464, 0.0004427343
        %v466 = vsel %vm465, %v463, %v460
        %v467 = vadd.f32 %v329, 1.0
        %v468 = vlog2.pop %v467
        %v469 = vmul.f32 %v468, 0.6931472
        %v470 = vmul.f32 -0.5, %v329
        %v471 = vadd.f32 %v470, 1.0
        %v472 = vmul.f32 %v471, %v329
        %v473 = vand.u32 2147483647, %v329
        %vm474 = vcmp.lt.f32.partialorder %v473, 0.0004427343
        %v475 = vsel %vm474, %v472, %v469
        %v476 = vadd.f32 %v331, 1.0
        %v477 = vlog2.pop %v476
        %v478 = vmul.f32 %v477, 0.6931472
        %v479 = vmul.f32 -0.5, %v331
        %v480 = vadd.f32 %v479, 1.0
        %v481 = vmul.f32 %v480, %v331
        %v482 = vand.u32 2147483647, %v331
        %vm483 = vcmp.lt.f32.partialorder %v482, 0.0004427343
        %v484 = vsel %vm483, %v481, %v478
        %v485 = vadd.f32 %v333, 1.0
        %v486 = vlog2.pop %v485
        %v487 = vmul.f32 %v486, 0.6931472
        %v488 = vmul.f32 -0.5, %v333
        %v489 = vadd.f32 %v488, 1.0
        %v490 = vmul.f32 %v489, %v333
        %v491 = vand.u32 2147483647, %v333
        %vm492 = vcmp.lt.f32.partialorder %v491, 0.0004427343
        %v493 = vsel %vm492, %v490, %v487
        %v494 = vadd.f32 %v414, %v430
        %v495 = vadd.f32 %v415, %v439
        %v496 = vadd.f32 %v416, %v448
        %v497 = vadd.f32 %v417, %v457
        %v498 = vadd.f32 %v418, %v466
        %v499 = vadd.f32 %v419, %v475
        %v500 = vadd.f32 %v420, %v484
        %v501 = vadd.f32 %v421, %v493
        %v502 = vld [vmem:[%s257] sm:$0xff]
        %v503 = vld [vmem:[%s257 + $0x8] sm:$0xff]
        %v504 = vld [vmem:[%s257 + $0x10] sm:$0xff]
        %v505 = vld [vmem:[%s257 + $0x18] sm:$0xff]
        %v506 = vmul.f32 %v286, %v390
        %v507 = vmul.f32 %v287, %v391
        %v508 = vmul.f32 %v288, %v392
        %v509 = vmul.f32 %v289, %v393
        %v510 = vmul.f32 %v290, %v394
        %v511 = vmul.f32 %v291, %v395
        %v512 = vmul.f32 %v292, %v396
        %v513 = vmul.f32 %v293, %v397
        %v522 = vcombine.low %v506, %v508
        %v523 = vcombine.high %v506, %v508
        %v524 = vcombine.low %v507, %v509
        %v525 = vcombine.high %v507, %v509
        %v526 = vcombine.low %v510, %v512
        %v527 = vcombine.high %v510, %v512
        %v528 = vcombine.low %v511, %v513
        %v529 = vcombine.high %v511, %v513
        %v538 = vadd.f32 %v522, %v526
        %v539 = vadd.f32 %v523, %v527
        %v540 = vadd.f32 %v524, %v528
        %v541 = vadd.f32 %v525, %v529
        %v542 = vadd.f32 %v502, %v538
        %v543 = vadd.f32 %v503, %v539
        %v544 = vadd.f32 %v504, %v540
        %v545 = vadd.f32 %v505, %v541
        %546 = vst [vmem:[%s257] sm:$0xff] %v542
        %547 = vst [vmem:[%s257 + $0x8] sm:$0xff] %v543
        %548 = vst [vmem:[%s257 + $0x10] sm:$0xff] %v544
        %549 = vst [vmem:[%s257 + $0x18] sm:$0xff] %v545
        %s550 = scalar_lea.vmem %s257, 32
        %v551 = vld [vmem:[%s550] sm:$0xff]
        %v552 = vld [vmem:[%s550 + $0x8] sm:$0xff]
        %v553 = vld [vmem:[%s550 + $0x10] sm:$0xff]
        %v554 = vld [vmem:[%s550 + $0x18] sm:$0xff]
        %v563 = vcombine.low %v390, %v392
        %v564 = vcombine.high %v390, %v392
        %v565 = vcombine.low %v391, %v393
        %v566 = vcombine.high %v391, %v393
        %v567 = vcombine.low %v394, %v396
        %v568 = vcombine.high %v394, %v396
        %v569 = vcombine.low %v395, %v397
        %v570 = vcombine.high %v395, %v397
        %v579 = vadd.f32 %v563, %v567
        %v580 = vadd.f32 %v564, %v568
        %v581 = vadd.f32 %v565, %v569
        %v582 = vadd.f32 %v566, %v570
        %v583 = vadd.f32 %v551, %v579
        %v584 = vadd.f32 %v552, %v580
        %v585 = vadd.f32 %v553, %v581
        %v586 = vadd.f32 %v554, %v582
        %587 = vst [vmem:[%s550] sm:$0xff] %v583
        %588 = vst [vmem:[%s550 + $0x8] sm:$0xff] %v584
        %589 = vst [vmem:[%s550 + $0x10] sm:$0xff] %v585
        %590 = vst [vmem:[%s550 + $0x18] sm:$0xff] %v586
        %s591 = scalar_lea.vmem %s257, 64
        %v592 = vld [vmem:[%s591] sm:$0xff]
        %v593 = vld [vmem:[%s591 + $0x8] sm:$0xff]
        %v594 = vld [vmem:[%s591 + $0x10] sm:$0xff]
        %v595 = vld [vmem:[%s591 + $0x18] sm:$0xff]
        %v604 = vcombine.low %v286, %v288
        %v605 = vcombine.high %v286, %v288
        %v606 = vcombine.low %v287, %v289
        %v607 = vcombine.high %v287, %v289
        %v608 = vcombine.low %v290, %v292
        %v609 = vcombine.high %v290, %v292
        %v610 = vcombine.low %v291, %v293
        %v611 = vcombine.high %v291, %v293
        %v620 = vadd.f32 %v604, %v608
        %v621 = vadd.f32 %v605, %v609
        %v622 = vadd.f32 %v606, %v610
        %v623 = vadd.f32 %v607, %v611
        %v624 = vadd.f32 %v592, %v620
        %v625 = vadd.f32 %v593, %v621
        %v626 = vadd.f32 %v594, %v622
        %v627 = vadd.f32 %v595, %v623
        %628 = vst [vmem:[%s591] sm:$0xff] %v624
        %629 = vst [vmem:[%s591 + $0x8] sm:$0xff] %v625
        %630 = vst [vmem:[%s591 + $0x10] sm:$0xff] %v626
        %631 = vst [vmem:[%s591 + $0x18] sm:$0xff] %v627
        %s632 = scalar_lea.vmem %s257, 96
        %v633 = vld [vmem:[%s632] sm:$0xff]
        %v634 = vld [vmem:[%s632 + $0x8] sm:$0xff]
        %v635 = vld [vmem:[%s632 + $0x10] sm:$0xff]
        %v636 = vld [vmem:[%s632 + $0x18] sm:$0xff]
        %v645 = vcombine.low %v494, %v496
        %v646 = vcombine.high %v494, %v496
        %v647 = vcombine.low %v495, %v497
        %v648 = vcombine.high %v495, %v497
        %v649 = vcombine.low %v498, %v500
        %v650 = vcombine.high %v498, %v500
        %v651 = vcombine.low %v499, %v501
        %v652 = vcombine.high %v499, %v501
        %v661 = vadd.f32 %v645, %v649
        %v662 = vadd.f32 %v646, %v650
        %v663 = vadd.f32 %v647, %v651
        %v664 = vadd.f32 %v648, %v652
        %v665 = vadd.f32 %v633, %v661
        %v666 = vadd.f32 %v634, %v662
        %v667 = vadd.f32 %v635, %v663
        %v668 = vadd.f32 %v636, %v664
        %669 = vst [vmem:[%s632] sm:$0xff] %v665
        %670 = vst [vmem:[%s632 + $0x8] sm:$0xff] %v666
        %671 = vst [vmem:[%s632 + $0x10] sm:$0xff] %v667
        %672 = vst [vmem:[%s632 + $0x18] sm:$0xff] %v668
      $region36: #{bce_dice_loss.1} parent=27 // pred_fallthru
        _
      %p673 = scmp.gt.s32.totalorder %s297, 2048
      // Predicated region
      $region37: #{bce_dice_loss.1} parent=27 // pred_check
        %p674 = pneg %p673
      $region38: #{bce_dice_loss.1} parent=27 // pred_check_branch
        %676 = sbr.rel (%p674) target = $region40
      $region39: #{bce_dice_loss.1} parent=27 // pred_region
        %v677 = vlaneseq
        %v678 = vshrl.u32 %v677, 7
        %v679 = vadd.s32 %v678, 8
        %v680 = vlaneseq
        %v681 = vand.u32 %v680, 127
        %v682 = vadd.s32 %v681, 128
        %v683 = vadd.s32 %v681, 256
        %v684 = vadd.s32 %v681, 384
        %v685 = vstv %s295
        %v686 = vadd.s32 %v685, %v678
        %v687 = vadd.s32 %v685, %v679
        %v688 = vmul.u32 %v686, 512
        %v689 = vmul.u32 %v687, 512
        %v690 = vadd.s32 %v688, %v681
        %v691 = vadd.s32 %v688, %v682
        %v692 = vadd.s32 %v688, %v683
        %v693 = vadd.s32 %v688, %v684
        %v694 = vadd.s32 %v689, %v681
        %v695 = vadd.s32 %v689, %v682
        %v696 = vadd.s32 %v689, %v683
        %v697 = vadd.s32 %v689, %v684
        %vm698 = vcmp.lt.s32.totalorder %v690, 2048
        %vm699 = vcmp.lt.s32.totalorder %v691, 2048
        %vm700 = vcmp.lt.s32.totalorder %v692, 2048
        %vm701 = vcmp.lt.s32.totalorder %v693, 2048
        %vm702 = vcmp.lt.s32.totalorder %v694, 2048
        %vm703 = vcmp.lt.s32.totalorder %v695, 2048
        %vm704 = vcmp.lt.s32.totalorder %v696, 2048
        %vm705 = vcmp.lt.s32.totalorder %v697, 2048
        %v714 = vcombine.low %v278, %v280
        %v715 = vcombine.high %v278, %v280
        %v716 = vcombine.low %v279, %v281
        %v717 = vcombine.high %v279, %v281
        %v718 = vcombine.low %v282, %v284
        %v719 = vcombine.high %v282, %v284
        %v720 = vcombine.low %v283, %v285
        %v721 = vcombine.high %v283, %v285
        %v730 = vsel %vm698, %v714, -10000.0
        %v731 = vsel %vm699, %v715, -10000.0
        %v732 = vsel %vm700, %v716, -10000.0
        %v733 = vsel %vm701, %v717, -10000.0
        %v734 = vsel %vm702, %v718, -10000.0
        %v735 = vsel %vm703, %v719, -10000.0
        %v736 = vsel %vm704, %v720, -10000.0
        %v737 = vsel %vm705, %v721, -10000.0
        %v746 = vcombine.low %v286, %v288
        %v747 = vcombine.high %v286, %v288
        %v748 = vcombine.low %v287, %v289
        %v749 = vcombine.high %v287, %v289
        %v750 = vcombine.low %v290, %v292
        %v751 = vcombine.high %v290, %v292
        %v752 = vcombine.low %v291, %v293
        %v753 = vcombine.high %v291, %v293
        %v762 = vsel %vm698, %v746, 0.0
        %v763 = vsel %vm699, %v747, 0.0
        %v764 = vsel %vm700, %v748, 0.0
        %v765 = vsel %vm701, %v749, 0.0
        %v766 = vsel %vm702, %v750, 0.0
        %v767 = vsel %vm703, %v751, 0.0
        %v768 = vsel %vm704, %v752, 0.0
        %v769 = vsel %vm705, %v753, 0.0
        %v770 = vand.u32 2147483647, %v730
        %v771 = vand.u32 2147483647, %v731
        %v772 = vand.u32 2147483647, %v732
        %v773 = vand.u32 2147483647, %v733
        %v774 = vand.u32 2147483647, %v734
        %v775 = vand.u32 2147483647, %v735
        %v776 = vand.u32 2147483647, %v736
        %v777 = vand.u32 2147483647, %v737
        %v778 = vsub.f32 0.0, %v770
        %v779 = vsub.f32 0.0, %v771
        %v780 = vsub.f32 0.0, %v772
        %v781 = vsub.f32 0.0, %v773
        %v782 = vsub.f32 0.0, %v774
        %v783 = vsub.f32 0.0, %v775
        %v784 = vsub.f32 0.0, %v776
        %v785 = vsub.f32 0.0, %v777
        %v786 = vmul.f32 %v778, 1.442695
        %v787 = vpow.pop %v786
        %v788 = vmul.f32 %v779, 1.442695
        %v789 = vpow.pop %v788
        %v790 = vmul.f32 %v780, 1.442695
        %v791 = vpow.pop %v790
        %v792 = vmul.f32 %v781, 1.442695
        %v793 = vpow.pop %v792
        %v794 = vmul.f32 %v782, 1.442695
        %v795 = vpow.pop %v794
        %v796 = vmul.f32 %v783, 1.442695
        %v797 = vpow.pop %v796
        %v798 = vmul.f32 %v784, 1.442695
        %v799 = vpow.pop %v798
        %v800 = vmul.f32 %v785, 1.442695
        %v801 = vpow.pop %v800
        %v802 = vadd.f32 %v787, 1.0
        %v803 = vadd.f32 %v789, 1.0
        %v804 = vadd.f32 %v791, 1.0
        %v805 = vadd.f32 %v793, 1.0
        %v806 = vadd.f32 %v795, 1.0
        %v807 = vadd.f32 %v797, 1.0
        %v808 = vadd.f32 %v799, 1.0
        %v809 = vadd.f32 %v801, 1.0
        %v810 = vrcp.pop %v802
        %v811 = vrcp.pop %v803
        %v812 = vrcp.pop %v804
        %v813 = vrcp.pop %v805
        %v814 = vrcp.pop %v806
        %v815 = vrcp.pop %v807
        %v816 = vrcp.pop %v808
        %v817 = vrcp.pop %v809
        %v818 = vmul.f32 %v802, %v810
        %v819 = vmul.f32 %v803, %v811
        %v820 = vmul.f32 %v804, %v812
        %v821 = vmul.f32 %v805, %v813
        %v822 = vmul.f32 %v806, %v814
        %v823 = vmul.f32 %v807, %v815
        %v824 = vmul.f32 %v808, %v816
        %v825 = vmul.f32 %v809, %v817
        %v826 = vsub.f32 2.0, %v818
        %v827 = vsub.f32 2.0, %v819
        %v828 = vsub.f32 2.0, %v820
        %v829 = vsub.f32 2.0, %v821
        %v830 = vsub.f32 2.0, %v822
        %v831 = vsub.f32 2.0, %v823
        %v832 = vsub.f32 2.0, %v824
        %v833 = vsub.f32 2.0, %v825
        %v834 = vmul.f32 %v810, %v826
        %v835 = vmul.f32 %v811, %v827
        %v836 = vmul.f32 %v812, %v828
        %v837 = vmul.f32 %v813, %v829
        %v838 = vmul.f32 %v814, %v830
        %v839 = vmul.f32 %v815, %v831
        %v840 = vmul.f32 %v816, %v832
        %v841 = vmul.f32 %v817, %v833
        %vm842 = vcmp.ge.f32.partialorder %v730, 0.0
        %vm843 = vcmp.ge.f32.partialorder %v731, 0.0
        %vm844 = vcmp.ge.f32.partialorder %v732, 0.0
        %vm845 = vcmp.ge.f32.partialorder %v733, 0.0
        %vm846 = vcmp.ge.f32.partialorder %v734, 0.0
        %vm847 = vcmp.ge.f32.partialorder %v735, 0.0
        %vm848 = vcmp.ge.f32.partialorder %v736, 0.0
        %vm849 = vcmp.ge.f32.partialorder %v737, 0.0
        %v850 = vmul.f32 %v787, %v834
        %v851 = vmul.f32 %v789, %v835
        %v852 = vmul.f32 %v791, %v836
        %v853 = vmul.f32 %v793, %v837
        %v854 = vmul.f32 %v795, %v838
        %v855 = vmul.f32 %v797, %v839
        %v856 = vmul.f32 %v799, %v840
        %v857 = vmul.f32 %v801, %v841
        %v858 = vsel %vm842, %v834, %v850
        %v859 = vsel %vm843, %v835, %v851
        %v860 = vsel %vm844, %v836, %v852
        %v861 = vsel %vm845, %v837, %v853
        %v862 = vsel %vm846, %v838, %v854
        %v863 = vsel %vm847, %v839, %v855
        %v864 = vsel %vm848, %v840, %v856
        %v865 = vsel %vm849, %v841, %v857
        %v866 = vmax.f32 %v730, 0.0
        %v867 = vmax.f32 %v731, 0.0
        %v868 = vmax.f32 %v732, 0.0
        %v869 = vmax.f32 %v733, 0.0
        %v870 = vmax.f32 %v734, 0.0
        %v871 = vmax.f32 %v735, 0.0
        %v872 = vmax.f32 %v736, 0.0
        %v873 = vmax.f32 %v737, 0.0
        %v874 = vmul.f32 %v730, %v762
        %v875 = vmul.f32 %v731, %v763
        %v876 = vmul.f32 %v732, %v764
        %v877 = vmul.f32 %v733, %v765
        %v878 = vmul.f32 %v734, %v766
        %v879 = vmul.f32 %v735, %v767
        %v880 = vmul.f32 %v736, %v768
        %v881 = vmul.f32 %v737, %v769
        %v882 = vsub.f32 %v866, %v874
        %v883 = vsub.f32 %v867, %v875
        %v884 = vsub.f32 %v868, %v876
        %v885 = vsub.f32 %v869, %v877
        %v886 = vsub.f32 %v870, %v878
        %v887 = vsub.f32 %v871, %v879
        %v888 = vsub.f32 %v872, %v880
        %v889 = vsub.f32 %v873, %v881
        %v890 = vadd.f32 %v787, 1.0
        %v891 = vlog2.pop %v890
        %v892 = vmul.f32 %v891, 0.6931472
        %v893 = vmul.f32 -0.5, %v787
        %v894 = vadd.f32 %v893, 1.0
        %v895 = vmul.f32 %v894, %v787
        %v896 = vand.u32 2147483647, %v787
        %vm897 = vcmp.lt.f32.partialorder %v896, 0.0004427343
        %v898 = vsel %vm897, %v895, %v892
        %v899 = vadd.f32 %v789, 1.0
        %v900 = vlog2.pop %v899
        %v901 = vmul.f32 %v900, 0.6931472
        %v902 = vmul.f32 -0.5, %v789
        %v903 = vadd.f32 %v902, 1.0
        %v904 = vmul.f32 %v903, %v789
        %v905 = vand.u32 2147483647, %v789
        %vm906 = vcmp.lt.f32.partialorder %v905, 0.0004427343
        %v907 = vsel %vm906, %v904, %v901
        %v908 = vadd.f32 %v791, 1.0
        %v909 = vlog2.pop %v908
        %v910 = vmul.f32 %v909, 0.6931472
        %v911 = vmul.f32 -0.5, %v791
        %v912 = vadd.f32 %v911, 1.0
        %v913 = vmul.f32 %v912, %v791
        %v914 = vand.u32 2147483647, %v791
        %vm915 = vcmp.lt.f32.partialorder %v914, 0.0004427343
        %v916 = vsel %vm915, %v913, %v910
        %v917 = vadd.f32 %v793, 1.0
        %v918 = vlog2.pop %v917
        %v919 = vmul.f32 %v918, 0.6931472
        %v920 = vmul.f32 -0.5, %v793
        %v921 = vadd.f32 %v920, 1.0
        %v922 = vmul.f32 %v921, %v793
        %v923 = vand.u32 2147483647, %v793
        %vm924 = vcmp.lt.f32.partialorder %v923, 0.0004427343
        %v925 = vsel %vm924, %v922, %v919
        %v926 = vadd.f32 %v795, 1.0
        %v927 = vlog2.pop %v926
        %v928 = vmul.f32 %v927, 0.6931472
        %v929 = vmul.f32 -0.5, %v795
        %v930 = vadd.f32 %v929, 1.0
        %v931 = vmul.f32 %v930, %v795
        %v932 = vand.u32 2147483647, %v795
        %vm933 = vcmp.lt.f32.partialorder %v932, 0.0004427343
        %v934 = vsel %vm933, %v931, %v928
        %v935 = vadd.f32 %v797, 1.0
        %v936 = vlog2.pop %v935
        %v937 = vmul.f32 %v936, 0.6931472
        %v938 = vmul.f32 -0.5, %v797
        %v939 = vadd.f32 %v938, 1.0
        %v940 = vmul.f32 %v939, %v797
        %v941 = vand.u32 2147483647, %v797
        %vm942 = vcmp.lt.f32.partialorder %v941, 0.0004427343
        %v943 = vsel %vm942, %v940, %v937
        %v944 = vadd.f32 %v799, 1.0
        %v945 = vlog2.pop %v944
        %v946 = vmul.f32 %v945, 0.6931472
        %v947 = vmul.f32 -0.5, %v799
        %v948 = vadd.f32 %v947, 1.0
        %v949 = vmul.f32 %v948, %v799
        %v950 = vand.u32 2147483647, %v799
        %vm951 = vcmp.lt.f32.partialorder %v950, 0.0004427343
        %v952 = vsel %vm951, %v949, %v946
        %v953 = vadd.f32 %v801, 1.0
        %v954 = vlog2.pop %v953
        %v955 = vmul.f32 %v954, 0.6931472
        %v956 = vmul.f32 -0.5, %v801
        %v957 = vadd.f32 %v956, 1.0
        %v958 = vmul.f32 %v957, %v801
        %v959 = vand.u32 2147483647, %v801
        %vm960 = vcmp.lt.f32.partialorder %v959, 0.0004427343
        %v961 = vsel %vm960, %v958, %v955
        %v962 = vadd.f32 %v882, %v898
        %v963 = vadd.f32 %v883, %v907
        %v964 = vadd.f32 %v884, %v916
        %v965 = vadd.f32 %v885, %v925
        %v966 = vadd.f32 %v886, %v934
        %v967 = vadd.f32 %v887, %v943
        %v968 = vadd.f32 %v888, %v952
        %v969 = vadd.f32 %v889, %v961
        %v970 = vld [vmem:[%s257] sm:$0xff]
        %v971 = vld [vmem:[%s257 + $0x8] sm:$0xff]
        %v972 = vld [vmem:[%s257 + $0x10] sm:$0xff]
        %v973 = vld [vmem:[%s257 + $0x18] sm:$0xff]
        %v974 = vmul.f32 %v762, %v858
        %v975 = vmul.f32 %v763, %v859
        %v976 = vmul.f32 %v764, %v860
        %v977 = vmul.f32 %v765, %v861
        %v978 = vmul.f32 %v766, %v862
        %v979 = vmul.f32 %v767, %v863
        %v980 = vmul.f32 %v768, %v864
        %v981 = vmul.f32 %v769, %v865
        %v982 = vadd.f32 %v974, %v978
        %v983 = vadd.f32 %v975, %v979
        %v984 = vadd.f32 %v976, %v980
        %v985 = vadd.f32 %v977, %v981
        %v986 = vadd.f32 %v970, %v982
        %v987 = vadd.f32 %v971, %v983
        %v988 = vadd.f32 %v972, %v984
        %v989 = vadd.f32 %v973, %v985
        %990 = vst [vmem:[%s257] sm:$0xff] %v986
        %991 = vst [vmem:[%s257 + $0x8] sm:$0xff] %v987
        %992 = vst [vmem:[%s257 + $0x10] sm:$0xff] %v988
        %993 = vst [vmem:[%s257 + $0x18] sm:$0xff] %v989
        %s994 = scalar_lea.vmem %s257, 32
        %v995 = vld [vmem:[%s994] sm:$0xff]
        %v996 = vld [vmem:[%s994 + $0x8] sm:$0xff]
        %v997 = vld [vmem:[%s994 + $0x10] sm:$0xff]
        %v998 = vld [vmem:[%s994 + $0x18] sm:$0xff]
        %v999 = vadd.f32 %v858, %v862
        %v1000 = vadd.f32 %v859, %v863
        %v1001 = vadd.f32 %v860, %v864
        %v1002 = vadd.f32 %v861, %v865
        %v1003 = vadd.f32 %v995, %v999
        %v1004 = vadd.f32 %v996, %v1000
        %v1005 = vadd.f32 %v997, %v1001
        %v1006 = vadd.f32 %v998, %v1002
        %1007 = vst [vmem:[%s994] sm:$0xff] %v1003
        %1008 = vst [vmem:[%s994 + $0x8] sm:$0xff] %v1004
        %1009 = vst [vmem:[%s994 + $0x10] sm:$0xff] %v1005
        %1010 = vst [vmem:[%s994 + $0x18] sm:$0xff] %v1006
        %s1011 = scalar_lea.vmem %s257, 64
        %v1012 = vld [vmem:[%s1011] sm:$0xff]
        %v1013 = vld [vmem:[%s1011 + $0x8] sm:$0xff]
        %v1014 = vld [vmem:[%s1011 + $0x10] sm:$0xff]
        %v1015 = vld [vmem:[%s1011 + $0x18] sm:$0xff]
        %v1016 = vadd.f32 %v762, %v766
        %v1017 = vadd.f32 %v763, %v767
        %v1018 = vadd.f32 %v764, %v768
        %v1019 = vadd.f32 %v765, %v769
        %v1020 = vadd.f32 %v1012, %v1016
        %v1021 = vadd.f32 %v1013, %v1017
        %v1022 = vadd.f32 %v1014, %v1018
        %v1023 = vadd.f32 %v1015, %v1019
        %1024 = vst [vmem:[%s1011] sm:$0xff] %v1020
        %1025 = vst [vmem:[%s1011 + $0x8] sm:$0xff] %v1021
        %1026 = vst [vmem:[%s1011 + $0x10] sm:$0xff] %v1022
        %1027 = vst [vmem:[%s1011 + $0x18] sm:$0xff] %v1023
        %s1028 = scalar_lea.vmem %s257, 96
        %v1029 = vld [vmem:[%s1028] sm:$0xff]
        %v1030 = vld [vmem:[%s1028 + $0x8] sm:$0xff]
        %v1031 = vld [vmem:[%s1028 + $0x10] sm:$0xff]
        %v1032 = vld [vmem:[%s1028 + $0x18] sm:$0xff]
        %v1033 = vadd.f32 %v962, %v966
        %v1034 = vadd.f32 %v963, %v967
        %v1035 = vadd.f32 %v964, %v968
        %v1036 = vadd.f32 %v965, %v969
        %v1037 = vadd.f32 %v1029, %v1033
        %v1038 = vadd.f32 %v1030, %v1034
        %v1039 = vadd.f32 %v1031, %v1035
        %v1040 = vadd.f32 %v1032, %v1036
        %1041 = vst [vmem:[%s1028] sm:$0xff] %v1037
        %1042 = vst [vmem:[%s1028 + $0x8] sm:$0xff] %v1038
        %1043 = vst [vmem:[%s1028 + $0x10] sm:$0xff] %v1039
        %1044 = vst [vmem:[%s1028 + $0x18] sm:$0xff] %v1040
      $region40: #{bce_dice_loss.1} parent=27 // pred_fallthru
        _
      %p1045 = scmp.lt.s32.totalorder %s17, 1
      %s1046 = scalar_select %p1045, %s17, 1
      %s1047 = smul.addr %s1046, 16
      %s1048 = smul.addr %s1047, 8
      %s1049 = scalar_lea.vmem %s2, %s1048
      // Predicated region
      $region41: #{bce_dice_loss.1} parent=27 // pred_check
        %p1050 = pneg %p107
      $region42: #{bce_dice_loss.1} parent=27 // pred_check_branch
        %1052 = sbr.rel (%p1050) target = $region44
      $region43: #{bce_dice_loss.1} parent=27 // pred_region
        _
      $region44: #{bce_dice_loss.1} parent=27 // pred_fallthru
        _
    $region28: #{bce_dice_loss.1} parent=5 // pred_fallthru
      _
    %p1053 = scmp.le.s32.totalorder 2, %s8
    // Predicated region
    $region45: #{bce_dice_loss.1} parent=5 // pred_check
      %p1054 = pneg %p1053
    $region46: #{bce_dice_loss.1} parent=5 // pred_check_branch
      %1056 = sbr.rel (%p1054) target = $region48
    $region47: #{bce_dice_loss.1} parent=5 // pred_region
      %s1057 = ssub.s32 %s8, 2
      // Predicated region
      $region49: #{bce_dice_loss.1} parent=47 // pred_check
        %p1058 = pneg %p113
      $region50: #{bce_dice_loss.1} parent=47 // pred_check_branch
        %1060 = sbr.rel (%p1058) target = $region52
      $region51: #{bce_dice_loss.1} parent=47 // pred_region
        %p1061 = scmp.lt.s32.totalorder %s19, 1
        %s1062 = scalar_select %p1061, %s19, 1
        %s1063 = smul.addr %s1062, 16
        %s1064 = smul.addr %s1063, 8
        %s1065 = scalar_lea.vmem %s2, %s1064
      $region52: #{bce_dice_loss.1} parent=47 // pred_fallthru
        _
    $region48: #{bce_dice_loss.1} parent=5 // pred_fallthru
      _
  $region6: #{bce_dice_loss.1} parent=0 // loop_footer
    %s12 = sadd.s32 1, %s8
  $region7: #{bce_dice_loss.1} parent=0 // loop_footer_branch
    %7 = sbr.rel target = $region3
  $region8: #{bce_dice_loss.1} parent=0 // loop_exit
    _

</llo_original>
